<compile_context>
chip_gen: v6e
topology: v6e:2x2x1
jax: 0.10.0
libtpu: 0.0.40
codegen_flags: <defaults>
</compile_context>

<pallas_src>
import jax
import jax.numpy as jnp
from jax import lax
from jax.experimental import pallas as pl
from jax.experimental.pallas import tpu as pltpu

LN_EPS = 1e-5                 # PyTorch nn.LayerNorm default
MXU_DTYPE = jnp.float32       # set to jnp.bfloat16 to double MXU rate (f32 accumulation kept)


# --------------------------------------------------------------------------------------
# small helpers
# --------------------------------------------------------------------------------------
def _round_up(n, m):
    return ((n + m - 1) // m) * m


def _row_tile(L, target=128):
    """Tile size along one residue axis (block keeps the other residue axis + channels full)."""
    if L <= target:
        return L
    for t in (target, 64, 32, 16, 8):
        if L % t == 0:
            return t
    return L


def _pair_tile(P, target=2048):
    """Tile size along the flattened (L*L) pair axis; must be lane-aligned unless full."""
    if P <= target:
        return P
    for t in (target, 1024, 512, 256, 128):
        if P % t == 0:
            return t
    return P


def _compiler_params(n_grid):
    return pltpu.CompilerParams(
        dimension_semantics=("parallel",) * n_grid,
        vmem_limit_bytes=48 * 1024 * 1024,
    )


def _mm(a, b):
    return jnp.dot(a.astype(MXU_DTYPE), b.astype(MXU_DTYPE),
                   preferred_element_type=jnp.float32)


def _bmm(eq, a, b):
    return jnp.einsum(eq, a.astype(MXU_DTYPE), b.astype(MXU_DTYPE),
                      preferred_element_type=jnp.float32)


def _ln2d(x2, g, b):
    """LayerNorm over the last dim of a 2-D (rows, D) slab."""
    mu = jnp.mean(x2, axis=-1, keepdims=True)
    xc = x2 - mu
    var = jnp.mean(xc * xc, axis=-1, keepdims=True)
    return xc * lax.rsqrt(var + LN_EPS) * g + b


# --------------------------------------------------------------------------------------
# Triangle attention: bias pre-pass kernel + fused (LN + MHA + gate + out-proj + residual)
# --------------------------------------------------------------------------------------
def _attn_bias_kernel(x_ref, g_ref, b_ref, wb_ref, o_ref):
    # pair bias b[q, k, h] = LN(x)[q, k, :] @ wb[:, h]   (one MXU matmul, all heads at once)
    _, tq, L, D = x_ref.shape
    H = wb_ref.shape[1]
    x2 = x_ref[0].astype(jnp.float32).reshape(tq * L, D)
    xn = _ln2d(x2, g_ref[...].astype(jnp.float32), b_ref[...].astype(jnp.float32))
    pb = _mm(xn, wb_ref[...])                                    # (tq*L, H)
    o_ref[0] = pb.reshape(tq, L, H).astype(o_ref.dtype)


def _attn_kernel(x_ref, bias_ref, kb_ref, g_ref, b_ref,
                 wq_ref, wk_ref, wv_ref, wg_ref, wo_ref, o_ref):
    _, tq, L, D = x_ref.shape
    H = bias_ref.shape[-1]
    HC = wq_ref.shape[1]
    C = HC // H
    scale = 1.0 / (C ** 0.5)

    x3 = x_ref[0].astype(jnp.float32)                            # (tq, L, D)
    x2 = x3.reshape(tq * L, D)
    xn = _ln2d(x2, g_ref[...].astype(jnp.float32), b_ref[...].astype(jnp.float32))

    # head-batched projections (single big MXU matmuls)
    q = _mm(xn, wq_ref[...]).reshape(tq, L, HC)
    k = _mm(xn, wk_ref[...]).reshape(tq, L, HC)
    v = _mm(xn, wv_ref[...]).reshape(tq, L, HC)
    gate = jax.nn.sigmoid(_mm(xn, wg_ref[...]))                  # (tq*L, HC)

    bias3 = bias_ref[0].astype(jnp.float32)                      # (L, L, H) finite proj bias
    kb3 = kb_ref[0].astype(jnp.float32)[None, :, :]              # (1, 1, L) -inf key mask
    head_iota = lax.broadcasted_iota(jnp.int32, (1, 1, H), 2)

    heads = []
    for h in range(H):                                           # static loop, MXU work only
        sl = slice(h * C, (h + 1) * C)
        qh, kh, vh = q[:, :, sl], k[:, :, sl], v[:, :, sl]
        e_h = (head_iota == h).astype(jnp.float32)
        bias_h = jnp.sum(bias3 * e_h, axis=-1)                   # (L, L)
        s = _bmm('iqc,ikc->iqk', qh, kh) * scale                 # (tq, L, L)
        s = s + bias_h[None, :, :] + kb3
        m = jnp.max(s, axis=-1, keepdims=True)
        p = jnp.exp(s - m)
        denom = jnp.sum(p, axis=-1, keepdims=True)
        p = p * pl.reciprocal(denom, approx=True)                # EUP, not VPU divide
        heads.append(_bmm('iqk,ikc->iqc', p, vh))                # (tq, L, C)

    o_cat = jnp.concatenate(heads, axis=-1).reshape(tq * L, HC)  # gated heads, one out-proj
    out = _mm(o_cat * gate, wo_ref[...])                         # (tq*L, D)
    o_ref[0] = (x3 + out.reshape(tq, L, D)).astype(o_ref.dtype)  # fused residual


def _attn_bias(x, ln, wb, tq):
    B, L, _, D = x.shape
    H = wb.shape[1]
    return pl.pallas_call(
        _attn_bias_kernel,
        out_shape=jax.ShapeDtypeStruct((B, L, L, H), jnp.float32),
        grid=(B, L // tq),
        in_specs=[
            pl.BlockSpec((1, tq, L, D), lambda b, i: (b, i, 0, 0)),
            pl.BlockSpec((1, D), lambda b, i: (0, 0)),
            pl.BlockSpec((1, D), lambda b, i: (0, 0)),
            pl.BlockSpec((D, H), lambda b, i: (0, 0)),
        ],
        out_specs=pl.BlockSpec((1, tq, L, H), lambda b, i: (b, i, 0, 0)),
        compiler_params=_compiler_params(2),
    )(x, ln["g"].reshape(1, D), ln["b"].reshape(1, D), wb)


def _triangle_attention(x, key_bias, ln, p, tq):
    B, L, _, D = x.shape
    bias = _attn_bias(x, ln, p["wb"], tq)                        # (B, L, L, H)
    H = bias.shape[-1]
    HC = p["wq"].shape[1]
    return pl.pallas_call(
        _attn_kernel,
        out_shape=jax.ShapeDtypeStruct(x.shape, x.dtype),
        grid=(B, L // tq),
        in_specs=[
            pl.BlockSpec((1, tq, L, D), lambda b, i: (b, i, 0, 0)),
            pl.BlockSpec((1, L, L, H), lambda b, i: (b, 0, 0, 0)),
            pl.BlockSpec((1, 1, L), lambda b, i: (b, 0, 0)),
            pl.BlockSpec((1, D), lambda b, i: (0, 0)),
            pl.BlockSpec((1, D), lambda b, i: (0, 0)),
            pl.BlockSpec((D, HC), lambda b, i: (0, 0)),
            pl.BlockSpec((D, HC), lambda b, i: (0, 0)),
            pl.BlockSpec((D, HC), lambda b, i: (0, 0)),
            pl.BlockSpec((D, HC), lambda b, i: (0, 0)),
            pl.BlockSpec((HC, D), lambda b, i: (0, 0)),
        ],
        out_specs=pl.BlockSpec((1, tq, L, D), lambda b, i: (b, i, 0, 0)),
        compiler_params=_compiler_params(2),
    )(x, bias, key_bias, ln["g"].reshape(1, D), ln["b"].reshape(1, D),
      p["wq"], p["wk"], p["wv"], p["wg"], p["wo"])


# --------------------------------------------------------------------------------------
# Triangle multiplication: three tiled kernels
#   A) fused LN + gated left/right projections, written channel-major (B, C, L*L)
#   B) MXU channel-batched contraction o[c,i,j] = sum_k l[c,i,k] r[c,j,k]  + LayerNorm(c)
#   C) output projection + output gate + residual
# --------------------------------------------------------------------------------------
def _trimul_proj_kernel(xp_ref, m_ref, g_ref, b_ref, wl_ref, wlg_ref, wr_ref, wrg_ref,
                        lT_ref, rT_ref):
    _, tp, D = xp_ref.shape
    x2 = xp_ref[0].astype(jnp.float32)                           # (tp, D)
    xn = _ln2d(x2, g_ref[...].astype(jnp.float32), b_ref[...].astype(jnp.float32))
    m = m_ref[0].astype(jnp.float32)                             # (tp, 1), 1 = valid pair
    l2 = _mm(xn, wl_ref[...]) * jax.nn.sigmoid(_mm(xn, wlg_ref[...])) * m
    r2 = _mm(xn, wr_ref[...]) * jax.nn.sigmoid(_mm(xn, wrg_ref[...])) * m
    lT_ref[0] = l2.T.astype(lT_ref.dtype)                        # (C, tp) channel-major
    rT_ref[0] = r2.T.astype(rT_ref.dtype)


def _trimul_contract_kernel(lT_ref, rT_ref, tg_ref, tb_ref, o_ref):
    lT = lT_ref[0]                                               # (C, ti, L)
    rT = rT_ref[0]                                               # (C, L, L)
    oT = _bmm('cik,cjk->cij', lT, rT)                            # MXU, contraction over k=L
    mu = jnp.mean(oT, axis=0, keepdims=True)                     # LayerNorm over channels
    oc = oT - mu
    var = jnp.mean(oc * oc, axis=0, keepdims=True)
    o_ref[0] = (oc * lax.rsqrt(var + LN_EPS)
                * tg_ref[...].astype(jnp.float32)
                + tb_ref[...].astype(jnp.float32)).astype(o_ref.dtype)


def _trimul_out_kernel(xp_ref, oln_ref, g_ref, b_ref, wo_ref, wog_ref, o_ref):
    x2 = xp_ref[0].astype(jnp.float32)                           # (tp, D)
    xn = _ln2d(x2, g_ref[...].astype(jnp.float32), b_ref[...].astype(jnp.float32))
    og = jax.nn.sigmoid(_mm(xn, wog_ref[...]))                   # (tp, D)
    o2 = oln_ref[0].astype(jnp.float32).T                        # (tp, C)
    out = _mm(o2, wo_ref[...]) * og                              # (tp, D)
    o_ref[0] = (x2 + out).astype(o_ref.dtype)                    # fused residual


def _triangle_multiplication(x, mask_pair, ln, p, ti):
    B, L, _, D = x.shape
    C = p["wl"].shape[1]
    P = L * L
    tp = _pair_tile(P)
    xp = x.reshape(B, P, D)
    mp = mask_pair.reshape(B, P, 1)

    lT, rT = pl.pallas_call(
        _trimul_proj_kernel,
        out_shape=(jax.ShapeDtypeStruct((B, C, P), jnp.float32),
                   jax.ShapeDtypeStruct((B, C, P), jnp.float32)),
        grid=(B, P // tp),
        in_specs=[
            pl.BlockSpec((1, tp, D), lambda b, i: (b, i, 0)),
            pl.BlockSpec((1, tp, 1), lambda b, i: (b, i, 0)),
            pl.BlockSpec((1, D), lambda b, i: (0, 0)),
            pl.BlockSpec((1, D), lambda b, i: (0, 0)),
            pl.BlockSpec((D, C), lambda b, i: (0, 0)),
            pl.BlockSpec((D, C), lambda b, i: (0, 0)),
            pl.BlockSpec((D, C), lambda b, i: (0, 0)),
            pl.BlockSpec((D, C), lambda b, i: (0, 0)),
        ],
        out_specs=(pl.BlockSpec((1, C, tp), lambda b, i: (b, 0, i)),
                   pl.BlockSpec((1, C, tp), lambda b, i: (b, 0, i))),
        compiler_params=_compiler_params(2),
    )(xp, mp, ln["g"].reshape(1, D), ln["b"].reshape(1, D),
      p["wl"], p["wlg"], p["wr"], p["wrg"])

    oln = pl.pallas_call(
        _trimul_contract_kernel,
        out_shape=jax.ShapeDtypeStruct((B, C, L, L), jnp.float32),
        grid=(B, L // ti),
        in_specs=[
            pl.BlockSpec((1, C, ti, L), lambda b, i: (b, 0, i, 0)),
            pl.BlockSpec((1, C, L, L), lambda b, i: (b, 0, 0, 0)),   # resident per batch
            pl.BlockSpec((C, 1, 1), lambda b, i: (0, 0, 0)),
            pl.BlockSpec((C, 1, 1), lambda b, i: (0, 0, 0)),
        ],
        out_specs=pl.BlockSpec((1, C, ti, L), lambda b, i: (b, 0, i, 0)),
        compiler_params=_compiler_params(2),
    )(lT.reshape(B, C, L, L), rT.reshape(B, C, L, L),
      p["ln_g"].reshape(C, 1, 1), p["ln_b"].reshape(C, 1, 1))

    out = pl.pallas_call(
        _trimul_out_kernel,
        out_shape=jax.ShapeDtypeStruct((B, P, D), x.dtype),
        grid=(B, P // tp),
        in_specs=[
            pl.BlockSpec((1, tp, D), lambda b, i: (b, i, 0)),
            pl.BlockSpec((1, C, tp), lambda b, i: (b, 0, i)),
            pl.BlockSpec((1, D), lambda b, i: (0, 0)),
            pl.BlockSpec((1, D), lambda b, i: (0, 0)),
            pl.BlockSpec((C, D), lambda b, i: (0, 0)),
            pl.BlockSpec((D, D), lambda b, i: (0, 0)),
        ],
        out_specs=pl.BlockSpec((1, tp, D), lambda b, i: (b, i, 0)),
        compiler_params=_compiler_params(2),
    )(xp, oln.reshape(B, C, P), ln["g"].reshape(1, D), ln["b"].reshape(1, D),
      p["wo"], p["wog"])
    return out.reshape(B, L, L, D)


# --------------------------------------------------------------------------------------
# FeedForward: fused LN + (x @ W1 + b1) -> relu -> (@ W2 + b2) + residual, row-tiled
# --------------------------------------------------------------------------------------
def _ffn_kernel(x_ref, g_ref, b_ref, w1_ref, b1_ref, w2_ref, b2_ref, o_ref):
    x = x_ref[...].astype(jnp.float32)
    xn = _ln2d(x, g_ref[...].astype(jnp.float32), b_ref[...].astype(jnp.float32))
    h = jnp.maximum(_mm(xn, w1_ref[...]) + b1_ref[...].astype(jnp.float32), 0.0)
    y = _mm(h, w2_ref[...]) + b2_ref[...].astype(jnp.float32)
    o_ref[...] = (x + y).astype(o_ref.dtype)


def _feed_forward(x, ln, p):
    D = x.shape[-1]
    F = p["w1"].shape[1]
    x2 = x.reshape(-1, D)
    M = x2.shape[0]
    tm = min(512, _round_up(M, 8))
    Mp = _round_up(M, tm)
    if Mp != M:
        x2 = jnp.pad(x2, ((0, Mp - M), (0, 0)))
    out = pl.pallas_call(
        _ffn_kernel,
        out_shape=jax.ShapeDtypeStruct((Mp, D), x.dtype),
        grid=(Mp // tm,),
        in_specs=[
            pl.BlockSpec((tm, D), lambda i: (i, 0)),
            pl.BlockSpec((1, D), lambda i: (0, 0)),
            pl.BlockSpec((1, D), lambda i: (0, 0)),
            pl.BlockSpec((D, F), lambda i: (0, 0)),
            pl.BlockSpec((1, F), lambda i: (0, 0)),
            pl.BlockSpec((F, D), lambda i: (0, 0)),
            pl.BlockSpec((1, D), lambda i: (0, 0)),
        ],
        out_specs=pl.BlockSpec((tm, D), lambda i: (i, 0)),
        compiler_params=_compiler_params(1),
    )(x2, ln["g"].reshape(1, D), ln["b"].reshape(1, D),
      p["w1"], p["b1"].reshape(1, F), p["w2"], p["b2"].reshape(1, D))
    if Mp != M:
        out = out[:M]
    return out.reshape(x.shape)


# --------------------------------------------------------------------------------------
# TriangleLayer forward (JAX glue: frame flips, mask/bias construction)
# --------------------------------------------------------------------------------------
def triangle_layer(x, mask, params):
    B, L, _, D = x.shape
    p = params
    tq = _row_tile(L)

    # bias = mask[:,None,None,None].float().masked_fill(mask, -inf) -> depends only on key idx
    key_bias = jnp.where(mask, -jnp.inf, 0.0).astype(jnp.float32).reshape(B, 1, L)
    valid = 1.0 - mask.astype(jnp.float32)
    mask_pair = valid[:, :, None] * valid[:, None, :]            # (B, L, L)

    # row-wise triangle attention (LN + residual fused inside the kernels)
    x = _triangle_attention(x, key_bias, p["row_norm"], p["row_attn"], tq)
    # column-wise triangle attention: flip the two residue axes
    x = jnp.swapaxes(x, 1, 2)
    x = _triangle_attention(x, key_bias, p["col_norm"], p["col_attn"], tq)
    # incoming triangle multiplication (still in the flipped frame)
    x = _triangle_multiplication(x, mask_pair, p["i_norm"], p["i_mul"], tq)
    # outgoing triangle multiplication (back in the original frame)
    x = jnp.swapaxes(x, 1, 2)
    x = _triangle_multiplication(x, mask_pair, p["o_norm"], p["o_mul"], tq)
    # feed-forward
    x = _feed_forward(x, p["ffn_norm"], p["ffn"])
    return x


# --------------------------------------------------------------------------------------
# Deterministic synthetic parameters (weights stored as (in, out), i.e. transposed relative
# to PyTorch's nn.Linear (out, in) convention).
# --------------------------------------------------------------------------------------
def init_params(key, d_model, d_key, n_head, dim_ff):
    keys = iter(jax.random.split(key, 64))

    def w(shape, scale=0.1):
        return scale * jax.random.normal(next(keys), shape, jnp.float32)

    def ln():
        return {"g": jnp.ones((d_model,), jnp.float32),
                "b": jnp.zeros((d_model,), jnp.float32)}

    def attn():
        hc = n_head * d_key
        return {"wb": w((d_model, n_head)),
                "wq": w((d_model, hc)), "wk": w((d_model, hc)),
                "wv": w((d_model, hc)), "wg": w((d_model, hc)),
                "wo": w((hc, d_model))}

    def mul():
        return {"wl": w((d_model, d_key)), "wlg": w((d_model, d_key)),
                "wr": w((d_model, d_key)), "wrg": w((d_model, d_key)),
                "ln_g": jnp.ones((d_key,), jnp.float32),
                "ln_b": jnp.zeros((d_key,), jnp.float32),
                "wo": w((d_key, d_model)), "wog": w((d_model, d_model))}

    return {
        "row_norm": ln(), "row_attn": attn(),
        "col_norm": ln(), "col_attn": attn(),
        "i_norm": ln(), "i_mul": mul(),
        "o_norm": ln(), "o_mul": mul(),
        "ffn_norm": ln(),
        "ffn": {"w1": w((d_model, dim_ff)), "b1": jnp.zeros((dim_ff,), jnp.float32),
                "w2": w((dim_ff, d_model)), "b2": jnp.zeros((d_model,), jnp.float32)},
    }


if __name__ == "__main__":
    B, L = 2, 8
    d_model, d_key, n_head, dim_ff = 32, 16, 4, 64

    root = jax.random.PRNGKey(0)
    kp, kx = jax.random.split(root)
    params = init_params(kp, d_model, d_key, n_head, dim_ff)

    x = jax.random.normal(kx, (B, L, L, d_model), jnp.float32)
    # padding mask: last two residues of batch 0 are padded, batch 1 fully valid
    mask = jnp.zeros((B, L), dtype=bool).at[0, -2:].set(True)

    out = triangle_layer(x, mask, params)
    jax.block_until_ready(out)
    assert out.shape == (B, L, L, d_model)
    assert bool(jnp.isfinite(out).all())
    print("KERNEL_OK")
</pallas_src>

<mosaic_0001>
module attributes {stable_mosaic.version = 11 : i64} {
  func.func @_attn_bias_kernel(%arg0: i32, %arg1: i32, %arg2: memref<1x8x8x32xf32, #tpu.memory_space<vmem>>, %arg3: memref<1x32xf32, #tpu.memory_space<vmem>>, %arg4: memref<1x32xf32, #tpu.memory_space<vmem>>, %arg5: memref<32x4xf32, #tpu.memory_space<vmem>>, %arg6: memref<1x8x8x4xf32, #tpu.memory_space<vmem>>) attributes {dimension_semantics = [#tpu.dimension_semantics<parallel>, #tpu.dimension_semantics<parallel>], iteration_bounds = array<i64: 2, 1>, scalar_prefetch = 0 : i64, scratch_operands = 0 : i64, tpu.core_type = #tpu.core_type<tc>, window_params = [{transform_indices = @transform_0, window_bounds = array<i64: 1, 8, 8, 32>}, {pipeline_mode = #tpu.pipeline_mode<synchronous>, transform_indices = @transform_1, window_bounds = array<i64: 1, 32>}, {pipeline_mode = #tpu.pipeline_mode<synchronous>, transform_indices = @transform_2, window_bounds = array<i64: 1, 32>}, {pipeline_mode = #tpu.pipeline_mode<synchronous>, transform_indices = @transform_3, window_bounds = array<i64: 32, 4>}, {transform_indices = @transform_4, window_bounds = array<i64: 1, 8, 8, 4>}]} {
    %c0 = arith.constant 0 : index
    %c0_0 = arith.constant 0 : index
    %c0_1 = arith.constant 0 : index
    %c0_2 = arith.constant 0 : index
    %0 = vector.load %arg2[%c0, %c0_0, %c0_1, %c0_2] : memref<1x8x8x32xf32, #tpu.memory_space<vmem>>, vector<1x8x8x32xf32>
    %1 = vector.shape_cast %0 : vector<1x8x8x32xf32> to vector<8x8x32xf32>
    %2 = vector.shape_cast %1 : vector<8x8x32xf32> to vector<64x32xf32>
    %c0_3 = arith.constant 0 : index
    %c0_4 = arith.constant 0 : index
    %3 = vector.load %arg3[%c0_3, %c0_4] : memref<1x32xf32, #tpu.memory_space<vmem>>, vector<1x32xf32>
    %c0_5 = arith.constant 0 : index
    %c0_6 = arith.constant 0 : index
    %4 = vector.load %arg4[%c0_5, %c0_6] : memref<1x32xf32, #tpu.memory_space<vmem>>, vector<1x32xf32>
    %cst = arith.constant dense<0.000000e+00> : vector<64xf32>
    %5 = vector.multi_reduction <add>, %2, %cst [1] : vector<64x32xf32> to vector<64xf32>
    %6 = vector.shape_cast %5 : vector<64xf32> to vector<64x1xf32>
    %cst_7 = arith.constant 3.200000e+01 : f32
    %7 = vector.broadcast %cst_7 : f32 to vector<64x1xf32>
    %8 = arith.divf %6, %7 : vector<64x1xf32>
    %9 = vector.broadcast %8 : vector<64x1xf32> to vector<64x32xf32>
    %10 = arith.subf %2, %9 : vector<64x32xf32>
    %11 = arith.mulf %10, %10 : vector<64x32xf32>
    %cst_8 = arith.constant dense<0.000000e+00> : vector<64xf32>
    %12 = vector.multi_reduction <add>, %11, %cst_8 [1] : vector<64x32xf32> to vector<64xf32>
    %13 = vector.shape_cast %12 : vector<64xf32> to vector<64x1xf32>
    %cst_9 = arith.constant 3.200000e+01 : f32
    %14 = vector.broadcast %cst_9 : f32 to vector<64x1xf32>
    %15 = arith.divf %13, %14 : vector<64x1xf32>
    %cst_10 = arith.constant 9.99999974E-6 : f32
    %16 = vector.broadcast %cst_10 : f32 to vector<64x1xf32>
    %17 = arith.addf %15, %16 : vector<64x1xf32>
    %18 = math.rsqrt %17 : vector<64x1xf32>
    %19 = vector.broadcast %18 : vector<64x1xf32> to vector<64x32xf32>
    %20 = arith.mulf %10, %19 : vector<64x32xf32>
    %21 = vector.broadcast %3 : vector<1x32xf32> to vector<64x32xf32>
    %22 = arith.mulf %20, %21 : vector<64x32xf32>
    %23 = vector.broadcast %4 : vector<1x32xf32> to vector<64x32xf32>
    %24 = arith.addf %22, %23 : vector<64x32xf32>
    %c0_11 = arith.constant 0 : index
    %c0_12 = arith.constant 0 : index
    %25 = vector.load %arg5[%c0_11, %c0_12] : memref<32x4xf32, #tpu.memory_space<vmem>>, vector<32x4xf32>
    %cst_13 = arith.constant dense<0.000000e+00> : vector<64x4xf32>
    %26 = tpu.matmul %24, %25, %cst_13 {dimension_numbers = #tpu.dot_dimension_numbers<[1], [0], [0], [1], [0, 0, 1, 1], [], []>} : vector<64x32xf32>, vector<32x4xf32>, vector<64x4xf32> -> vector<64x4xf32>
    %27 = vector.shape_cast %26 : vector<64x4xf32> to vector<8x8x4xf32>
    %c0_14 = arith.constant 0 : index
    %c0_15 = arith.constant 0 : index
    %c0_16 = arith.constant 0 : index
    %c0_17 = arith.constant 0 : index
    %28 = vector.load %arg6[%c0_14, %c0_15, %c0_16, %c0_17] : memref<1x8x8x4xf32, #tpu.memory_space<vmem>>, vector<1x8x8x4xf32>
    %29 = vector.shape_cast %28 : vector<1x8x8x4xf32> to vector<8x8x4xf32>
    %30 = vector.shape_cast %27 : vector<8x8x4xf32> to vector<1x8x8x4xf32>
    tpu.vector_store %arg6[%c0_14, %c0_15, %c0_16, %c0_17], %30 {strides = array<i32>} : memref<1x8x8x4xf32, #tpu.memory_space<vmem>>, vector<1x8x8x4xf32>,
    return
  }
  func.func @transform_0(%arg0: i32, %arg1: i32) -> (i32, i32, i32, i32) {
    %c0_i32 = arith.constant 0 : i32
    %c0_i32_0 = arith.constant 0 : i32
    %c0_i32_1 = arith.constant 0 : i32
    return %arg0, %arg1, %c0_i32, %c0_i32_0 : i32, i32, i32, i32
  }
  func.func @transform_1(%arg0: i32, %arg1: i32) -> (i32, i32) {
    %c0_i32 = arith.constant 0 : i32
    %c0_i32_0 = arith.constant 0 : i32
    %c0_i32_1 = arith.constant 0 : i32
    return %c0_i32, %c0_i32_0 : i32, i32
  }
  func.func @transform_2(%arg0: i32, %arg1: i32) -> (i32, i32) {
    %c0_i32 = arith.constant 0 : i32
    %c0_i32_0 = arith.constant 0 : i32
    %c0_i32_1 = arith.constant 0 : i32
    return %c0_i32, %c0_i32_0 : i32, i32
  }
  func.func @transform_3(%arg0: i32, %arg1: i32) -> (i32, i32) {
    %c0_i32 = arith.constant 0 : i32
    %c0_i32_0 = arith.constant 0 : i32
    %c0_i32_1 = arith.constant 0 : i32
    return %c0_i32, %c0_i32_0 : i32, i32
  }
  func.func @transform_4(%arg0: i32, %arg1: i32) -> (i32, i32, i32, i32) {
    %c0_i32 = arith.constant 0 : i32
    %c0_i32_0 = arith.constant 0 : i32
    %c0_i32_1 = arith.constant 0 : i32
    return %arg0, %arg1, %c0_i32, %c0_i32_0 : i32, i32, i32, i32
  }
}

</mosaic_0001>

<llo_original>
// kernel: tpu_custom_call.1
$region0: #{tpu_custom_call.1}
  #allocation0 [shape = 'u32[]', space=smem, size = 0x4, offset = 0x4, fixed_abs, tag = 'smem constant byte address 0x4 - core index']
  #allocation1 [shape = 'u32[144,128]{1,0:T(1,128)}', space=vmem, size = 0x12000, scoped, tag = 'internal scratch']
  %s0 = inlined_call_operand.hbm [shape: f32[2,8,8,32], index: 0, kind: input, shape index: {}]
  %s1 = inlined_call_operand.vmem [shape: f32[1,32], index: 1, kind: input, shape index: {}]
  %s2 = inlined_call_operand.vmem [shape: f32[1,32], index: 2, kind: input, shape index: {}]
  %s3 = inlined_call_operand.vmem [shape: f32[32,4], index: 3, kind: input, shape index: {}]
  %s4 = inlined_call_operand.vmem [shape: f32[2,8,8,4], index: 4, kind: output, shape index: {}]
  %s5 = sld [smem:[#allocation0]]
  $region53: #{tpu_custom_call.1} parent=0
    _
  %s7 = ssub.s32 1, %s5
  %s8 = scalar_select 0, %s7, %s5
  $region1: #{tpu_custom_call.1} parent=0
    #allocation2 [shape = 'u8[65536]{0}', space=vmem, size = 0x10000, scoped, tag = 'input window, operand 0']
    #allocation3 [shape = 's32[2]{0}', space=sflag, size = 0x8, scoped, tag = 'scoped memory for tpu_custom_call.1']
    %9 = vsyncpa [#allocation3], 0
    %s10 = scalar_lea.sflag [#allocation3], 1
    %11 = vsyncpa %s10, 0
    loop: start=0, step=1, limit=4
    $region2: #{tpu_custom_call.1} parent=1 // loop_pre_header
      _
    $region3: #{tpu_custom_call.1} parent=1 // loop_header
      %s13 = sphi 0, %s17
      %p14 = scmp.ge.s32.totalorder %s13, 4
      %s20 = sphi 0, %s32
      %s21 = sphi 0, %s28
      %s22 = sphi 0, %s20
      %s23 = sphi 0, %s21
      %s24 = sphi 0, %s22
      %s25 = sphi 0, %s23
      %s37 = sphi 0, %s39
      %s40 = sphi 0, %s37
      %s41 = sphi 0, %s40
      %s57 = sphi 0, %s41
      %s61 = sphi 0, %s61
      %s63 = sphi 0, %s61
      %s64 = sphi 0, %s63
      %s78 = sphi 0, %s64
      %s82 = sphi 0, %s82
      %s84 = sphi 0, %s82
      %s85 = sphi 0, %s84
      %s99 = sphi 0, %s85
      %s103 = sphi 0, %s103
      %s105 = sphi 0, %s103
      %s106 = sphi 0, %s105
      %s120 = sphi 0, %s106
      %s128 = sphi 0, %s130
      %s131 = sphi 0, %s128
      %s132 = sphi 0, %s131
      %s148 = sphi 0, %s132
    $region4: #{tpu_custom_call.1} parent=1 // loop_header_branch
      %16 = sbr.rel (%p14) target = $region8
    $region5: #{tpu_custom_call.1} parent=1 // loop_body
      %s18 = ssub.s32 %s13, 1
      %s19 = ssub.s32 %s13, 2
      %s26 = sadd.s32 1, %s21
      %p27 = scmp.ge.s32.totalorder %s26, 1
      %s28 = scalar_select %p27, 0, %s26
      %s29 = sadd.s32 1, %s20
      %s30 = scalar_select %p27, %s29, %s20
      %p31 = scmp.ge.s32.totalorder %s30, 2
      %s32 = scalar_select %p31, 0, %s30
      %s33 = ssub.s32 %s20, %s32
      %s34 = ssub.s32 %s21, %s28
      %s35 = sor.u32 %s33, %s34
      %p36 = scmp.eq.s32.totalorder %s35, 0
      %s38 = sadd.s32 %s37, 1
      %s39 = scalar_select %p36, %s37, %s38
      %p42 = pneg %p36
      %p43 = scmp.eq.s32.totalorder %s13, 1
      %p44 = por %p42, %p43
      %p45 = scmp.ne.s32.totalorder %s37, %s40
      %p46 = scmp.eq.s32.totalorder %s13, 0
      %p47 = por %p45, %p46
      %p48 = scmp.ne.s32.totalorder %s37, %s40
      %p49 = scmp.eq.s32.totalorder %s18, 1
      %p50 = por %p48, %p49
      %p51 = scmp.ne.s32.totalorder %s40, %s41
      %p52 = scmp.eq.s32.totalorder %s18, 0
      %p53 = por %p51, %p52
      %p54 = scmp.ne.s32.totalorder %s40, %s41
      %p55 = scmp.eq.s32.totalorder %s19, 1
      %p56 = por %p54, %p55
      %p58 = scmp.ne.s32.totalorder %s41, %s57
      %p59 = scmp.eq.s32.totalorder %s19, 0
      %p60 = por %p58, %p59
      %s62 = sadd.s32 %s61, 1
      %p65 = scmp.eq.s32.totalorder %s13, 1
      %p66 = scmp.ne.s32.totalorder %s61, %s63
      %p67 = scmp.eq.s32.totalorder %s13, 0
      %p68 = por %p66, %p67
      %p69 = scmp.ne.s32.totalorder %s61, %s63
      %p70 = scmp.eq.s32.totalorder %s18, 1
      %p71 = por %p69, %p70
      %p72 = scmp.ne.s32.totalorder %s63, %s64
      %p73 = scmp.eq.s32.totalorder %s18, 0
      %p74 = por %p72, %p73
      %p75 = scmp.ne.s32.totalorder %s63, %s64
      %p76 = scmp.eq.s32.totalorder %s19, 1
      %p77 = por %p75, %p76
      %p79 = scmp.ne.s32.totalorder %s64, %s78
      %p80 = scmp.eq.s32.totalorder %s19, 0
      %p81 = por %p79, %p80
      %s83 = sadd.s32 %s82, 1
      %p86 = scmp.eq.s32.totalorder %s13, 1
      %p87 = scmp.ne.s32.totalorder %s82, %s84
      %p88 = scmp.eq.s32.totalorder %s13, 0
      %p89 = por %p87, %p88
      %p90 = scmp.ne.s32.totalorder %s82, %s84
      %p91 = scmp.eq.s32.totalorder %s18, 1
      %p92 = por %p90, %p91
      %p93 = scmp.ne.s32.totalorder %s84, %s85
      %p94 = scmp.eq.s32.totalorder %s18, 0
      %p95 = por %p93, %p94
      %p96 = scmp.ne.s32.totalorder %s84, %s85
      %p97 = scmp.eq.s32.totalorder %s19, 1
      %p98 = por %p96, %p97
      %p100 = scmp.ne.s32.totalorder %s85, %s99
      %p101 = scmp.eq.s32.totalorder %s19, 0
      %p102 = por %p100, %p101
      %s104 = sadd.s32 %s103, 1
      %p107 = scmp.eq.s32.totalorder %s13, 1
      %p108 = scmp.ne.s32.totalorder %s103, %s105
      %p109 = scmp.eq.s32.totalorder %s13, 0
      %p110 = por %p108, %p109
      %p111 = scmp.ne.s32.totalorder %s103, %s105
      %p112 = scmp.eq.s32.totalorder %s18, 1
      %p113 = por %p111, %p112
      %p114 = scmp.ne.s32.totalorder %s105, %s106
      %p115 = scmp.eq.s32.totalorder %s18, 0
      %p116 = por %p114, %p115
      %p117 = scmp.ne.s32.totalorder %s105, %s106
      %p118 = scmp.eq.s32.totalorder %s19, 1
      %p119 = por %p117, %p118
      %p121 = scmp.ne.s32.totalorder %s106, %s120
      %p122 = scmp.eq.s32.totalorder %s19, 0
      %p123 = por %p121, %p122
      %s124 = ssub.s32 %s20, %s32
      %s125 = ssub.s32 %s21, %s28
      %s126 = sor.u32 %s124, %s125
      %p127 = scmp.eq.s32.totalorder %s126, 0
      %s129 = sadd.s32 %s128, 1
      %s130 = scalar_select %p127, %s128, %s129
      %p133 = pneg %p127
      %p134 = scmp.eq.s32.totalorder %s13, 1
      %p135 = por %p133, %p134
      %p136 = scmp.ne.s32.totalorder %s128, %s131
      %p137 = scmp.eq.s32.totalorder %s13, 0
      %p138 = por %p136, %p137
      %p139 = scmp.ne.s32.totalorder %s128, %s131
      %p140 = scmp.eq.s32.totalorder %s18, 1
      %p141 = por %p139, %p140
      %p142 = scmp.ne.s32.totalorder %s131, %s132
      %p143 = scmp.eq.s32.totalorder %s18, 0
      %p144 = por %p142, %p143
      %p145 = scmp.ne.s32.totalorder %s131, %s132
      %p146 = scmp.eq.s32.totalorder %s19, 1
      %p147 = por %p145, %p146
      %p149 = scmp.ne.s32.totalorder %s132, %s148
      %p150 = scmp.eq.s32.totalorder %s19, 0
      %p151 = por %p149, %p150
      %p152 = scmp.le.s32.totalorder 1, %s13
      %p153 = scmp.lt.s32.totalorder %s13, 3
      %p154 = pnand %p152, %p153
      %p155 = pneg %p154
      // Predicated region
      $region9: #{tpu_custom_call.1} parent=5 // pred_check
        _
      $region10: #{tpu_custom_call.1} parent=5 // pred_check_branch
        %157 = sbr.rel (%p154) target = $region12
      $region11: #{tpu_custom_call.1} parent=5 // pred_region
        %s158 = ssub.s32 %s13, 1
        // Predicated region
        $region13: #{tpu_custom_call.1} parent=11 // pred_check
          %p159 = pneg %p74
        $region14: #{tpu_custom_call.1} parent=11 // pred_check_branch
          %161 = sbr.rel (%p159) target = $region16
        $region15: #{tpu_custom_call.1} parent=11 // pred_region
          _
        $region16: #{tpu_custom_call.1} parent=11 // pred_fallthru
          _
        // Predicated region
        $region17: #{tpu_custom_call.1} parent=11 // pred_check
          %p162 = pneg %p95
        $region18: #{tpu_custom_call.1} parent=11 // pred_check_branch
          %164 = sbr.rel (%p162) target = $region20
        $region19: #{tpu_custom_call.1} parent=11 // pred_region
          _
        $region20: #{tpu_custom_call.1} parent=11 // pred_fallthru
          _
        // Predicated region
        $region21: #{tpu_custom_call.1} parent=11 // pred_check
          %p165 = pneg %p116
        $region22: #{tpu_custom_call.1} parent=11 // pred_check_branch
          %167 = sbr.rel (%p165) target = $region24
        $region23: #{tpu_custom_call.1} parent=11 // pred_region
          _
        $region24: #{tpu_custom_call.1} parent=11 // pred_fallthru
          _
      $region12: #{tpu_custom_call.1} parent=5 // pred_fallthru
        _
      %p168 = scmp.lt.s32.totalorder %s13, 2
      // Predicated region
      $region25: #{tpu_custom_call.1} parent=5 // pred_check
        %p169 = pneg %p168
      $region26: #{tpu_custom_call.1} parent=5 // pred_check_branch
        %171 = sbr.rel (%p169) target = $region28
      $region27: #{tpu_custom_call.1} parent=5 // pred_region
        // Predicated region
        $region29: #{tpu_custom_call.1} parent=27 // pred_check
          %p172 = pneg %p47
        $region30: #{tpu_custom_call.1} parent=27 // pred_check_branch
          %174 = sbr.rel (%p172) target = $region32
        $region31: #{tpu_custom_call.1} parent=27 // pred_region
          %s175 = sand.u32 %s37, 1
          %s176 = scalar_lea.sflag [#allocation3], %s175
          %s177 = sand.u32 %s37, 1
          %s178 = smul.addr %s177, 64
          %s179 = scalar_lea.vmem [#allocation2], %s178
          %s180 = smul.u32 8, %s21
          %s182 = ssub.s32 1024, 1024
          %183 = vsyncadd %s176, %s182
          %s184 = smul.addr %s20, 8
          %s185 = sadd.s32 %s180, %s184
          %s186 = smul.addr %s185, 128
          %s187 = scalar_lea.hbm %s0, %s186
          %s188 = sshll.u32 %s179, 4
          %s189 = int_to_ptr.vmem [resolvable:$true] %s188
          %194 = dma.hbm_to_vmem [thread:$0]  %s187, 1024, %s189, %s176, 128, 128, 8
        $region32: #{tpu_custom_call.1} parent=27 // pred_fallthru
          _
      $region28: #{tpu_custom_call.1} parent=5 // pred_fallthru
        _
      %p195 = scmp.le.s32.totalorder 1, %s13
      %p196 = scmp.lt.s32.totalorder %s13, 3
      %p197 = pnand %p195, %p196
      %p198 = pneg %p197
      // Predicated region
      $region33: #{tpu_custom_call.1} parent=5 // pred_check
        _
      $region34: #{tpu_custom_call.1} parent=5 // pred_check_branch
        %200 = sbr.rel (%p197) target = $region36
      $region35: #{tpu_custom_call.1} parent=5 // pred_region
        %s201 = ssub.s32 %s13, 1
        %s202 = sand.u32 %s40, 1
        %s203 = scalar_lea.sflag [#allocation3], %s202
        %s204 = sand.u32 %s40, 1
        %s205 = smul.addr %s204, 64
        %s206 = scalar_lea.vmem [#allocation2], %s205
        // Predicated region
        $region37: #{tpu_custom_call.1} parent=35 // pred_check
          %p207 = pneg %p53
        $region38: #{tpu_custom_call.1} parent=35 // pred_check_branch
          %209 = sbr.rel (%p207) target = $region40
        $region39: #{tpu_custom_call.1} parent=35 // pred_region
          %210 = dma.done %s203, 1024
        $region40: #{tpu_custom_call.1} parent=35 // pred_fallthru
          _
        %s211 = sand.u32 %s40, 1
        %s212 = scalar_lea.sflag [#allocation3], %s211
        %s213 = sand.u32 %s40, 1
        %s214 = smul.addr %s213, 64
        %s215 = scalar_lea.vmem [#allocation2], %s214
        %p216 = pneg %p53
        %p217 = pneg %p50
        %p218 = pneg %p74
        %p219 = pneg %p71
        %p220 = pneg %p95
        %p221 = pneg %p92
        %p222 = pneg %p116
        %p223 = pneg %p113
        %p224 = pneg %p144
        %p225 = pneg %p141
        %s226 = smul.u32 8, %s23
        %p227 = scmp.lt.s32.totalorder %s22, 1
        %s228 = scalar_select %p227, %s22, 1
        %p229 = scmp.lt.s32.totalorder %s226, 7
        %s230 = scalar_select %p229, %s226, 7
        %s231 = smul.addr %s228, 8
        %s232 = sadd.s32 %s230, %s231
        %s233 = smul.addr %s232, 8
        %s234 = scalar_lea.vmem %s4, %s233
        %s235 = smul.u32 8, %s23
        %s236 = smul.u32 8, %s23
        %p237 = scmp.lt.s32.totalorder %s22, 1
        %s238 = scalar_select %p237, %s22, 1
        %p239 = scmp.lt.s32.totalorder %s236, 7
        %s240 = scalar_select %p239, %s236, 7
        %s241 = smul.addr %s238, 8
        %s242 = sadd.s32 %s240, %s241
        %s243 = smul.addr %s242, 8
        %s244 = scalar_lea.vmem %s4, %s243
        %s245 = smul.u32 8, %s23
        %v246 = vld [vmem:[%s206] sm:$0xff]
        %v247 = vld [vmem:[%s206 + $0x8] sm:$0xff]
        %v248 = vld [vmem:[%s206 + $0x10] sm:$0xff]
        %v249 = vld [vmem:[%s206 + $0x18] sm:$0xff]
        %v250 = vld [vmem:[%s206 + $0x20] sm:$0xff]
        %v251 = vld [vmem:[%s206 + $0x28] sm:$0xff]
        %v252 = vld [vmem:[%s206 + $0x30] sm:$0xff]
        %v253 = vld [vmem:[%s206 + $0x38] sm:$0xff]
        %v254 = vld [vmem:[%s1] sm:$0x1]
        %v255 = vld [vmem:[%s2] sm:$0x1]
        %vm256 = vcmask 261120
        %v257 = vsel %vm256, %v246, 0.0
        %258 = vadd.xlane.f32.xlu0 %v257
        %v259 = vpop.xlane.xlu0 %258
        %v260 = vsel %vm256, %v247, 0.0
        %261 = vadd.xlane.f32.xlu0 %v260
        %v262 = vpop.xlane.xlu0 %261
        %v263 = vsel %vm256, %v248, 0.0
        %264 = vadd.xlane.f32.xlu0 %v263
        %v265 = vpop.xlane.xlu0 %264
        %v266 = vsel %vm256, %v249, 0.0
        %267 = vadd.xlane.f32.xlu0 %v266
        %v268 = vpop.xlane.xlu0 %267
        %v269 = vsel %vm256, %v250, 0.0
        %270 = vadd.xlane.f32.xlu0 %v269
        %v271 = vpop.xlane.xlu0 %270
        %v272 = vsel %vm256, %v251, 0.0
        %273 = vadd.xlane.f32.xlu0 %v272
        %v274 = vpop.xlane.xlu0 %273
        %v275 = vsel %vm256, %v252, 0.0
        %276 = vadd.xlane.f32.xlu0 %v275
        %v277 = vpop.xlane.xlu0 %276
        %v278 = vsel %vm256, %v253, 0.0
        %279 = vadd.xlane.f32.xlu0 %v278
        %v280 = vpop.xlane.xlu0 %279
        %v281 = vrcp.pop 32.0
        %v282 = vmul.f32 %v259, %v281
        %v283 = vmul.f32 %v262, %v281
        %v284 = vmul.f32 %v265, %v281
        %v285 = vmul.f32 %v268, %v281
        %v286 = vmul.f32 %v271, %v281
        %v287 = vmul.f32 %v274, %v281
        %v288 = vmul.f32 %v277, %v281
        %v289 = vmul.f32 %v280, %v281
        %v290 = vsub.f32 %v246, %v282
        %v291 = vsub.f32 %v247, %v283
        %v292 = vsub.f32 %v248, %v284
        %v293 = vsub.f32 %v249, %v285
        %v294 = vsub.f32 %v250, %v286
        %v295 = vsub.f32 %v251, %v287
        %v296 = vsub.f32 %v252, %v288
        %v297 = vsub.f32 %v253, %v289
        %v298 = vmul.f32 %v290, %v290
        %v299 = vmul.f32 %v291, %v291
        %v300 = vmul.f32 %v292, %v292
        %v301 = vmul.f32 %v293, %v293
        %v302 = vmul.f32 %v294, %v294
        %v303 = vmul.f32 %v295, %v295
        %v304 = vmul.f32 %v296, %v296
        %v305 = vmul.f32 %v297, %v297
        %v306 = vsel %vm256, %v298, 0.0
        %307 = vadd.xlane.f32.xlu0 %v306
        %v308 = vpop.xlane.xlu0 %307
        %v309 = vsel %vm256, %v299, 0.0
        %310 = vadd.xlane.f32.xlu0 %v309
        %v311 = vpop.xlane.xlu0 %310
        %v312 = vsel %vm256, %v300, 0.0
        %313 = vadd.xlane.f32.xlu0 %v312
        %v314 = vpop.xlane.xlu0 %313
        %v315 = vsel %vm256, %v301, 0.0
        %316 = vadd.xlane.f32.xlu0 %v315
        %v317 = vpop.xlane.xlu0 %316
        %v318 = vsel %vm256, %v302, 0.0
        %319 = vadd.xlane.f32.xlu0 %v318
        %v320 = vpop.xlane.xlu0 %319
        %v321 = vsel %vm256, %v303, 0.0
        %322 = vadd.xlane.f32.xlu0 %v321
        %v323 = vpop.xlane.xlu0 %322
        %v324 = vsel %vm256, %v304, 0.0
        %325 = vadd.xlane.f32.xlu0 %v324
        %v326 = vpop.xlane.xlu0 %325
        %v327 = vsel %vm256, %v305, 0.0
        %328 = vadd.xlane.f32.xlu0 %v327
        %v329 = vpop.xlane.xlu0 %328
        %v330 = vmul.f32 %v308, %v281
        %v331 = vmul.f32 %v311, %v281
        %v332 = vmul.f32 %v314, %v281
        %v333 = vmul.f32 %v317, %v281
        %v334 = vmul.f32 %v320, %v281
        %v335 = vmul.f32 %v323, %v281
        %v336 = vmul.f32 %v326, %v281
        %v337 = vmul.f32 %v329, %v281
        %v338 = vadd.f32 %v330, 1e-05
        %v339 = vadd.f32 %v331, 1e-05
        %v340 = vadd.f32 %v332, 1e-05
        %v341 = vadd.f32 %v333, 1e-05
        %v342 = vadd.f32 %v334, 1e-05
        %v343 = vadd.f32 %v335, 1e-05
        %v344 = vadd.f32 %v336, 1e-05
        %v345 = vadd.f32 %v337, 1e-05
        %v346 = vrsqrt.pop %v338
        %v347 = vrsqrt.pop %v339
        %v348 = vrsqrt.pop %v340
        %v349 = vrsqrt.pop %v341
        %v350 = vrsqrt.pop %v342
        %v351 = vrsqrt.pop %v343
        %v352 = vrsqrt.pop %v344
        %v353 = vrsqrt.pop %v345
        %v354 = vmul.f32 %v290, %v346
        %v355 = vmul.f32 %v291, %v347
        %v356 = vmul.f32 %v292, %v348
        %v357 = vmul.f32 %v293, %v349
        %v358 = vmul.f32 %v294, %v350
        %v359 = vmul.f32 %v295, %v351
        %v360 = vmul.f32 %v296, %v352
        %v361 = vmul.f32 %v297, %v353
        %v363 = vlaneseq
        %v364 = vshrl.u32 %v363, 7
        %v365 = vsub.s32 0, %v364
        %v366 = vrot.slane %v254, %v365
        %v368 = vmul.f32 %v354, %v366
        %v369 = vmul.f32 %v355, %v366
        %v370 = vmul.f32 %v356, %v366
        %v371 = vmul.f32 %v357, %v366
        %v372 = vmul.f32 %v358, %v366
        %v373 = vmul.f32 %v359, %v366
        %v374 = vmul.f32 %v360, %v366
        %v375 = vmul.f32 %v361, %v366
        %v377 = vlaneseq
        %v378 = vshrl.u32 %v377, 7
        %v379 = vsub.s32 0, %v378
        %v380 = vrot.slane %v255, %v379
        %v382 = vadd.f32 %v368, %v380
        %v383 = vadd.f32 %v369, %v380
        %v384 = vadd.f32 %v370, %v380
        %v385 = vadd.f32 %v371, %v380
        %v386 = vadd.f32 %v372, %v380
        %v387 = vadd.f32 %v373, %v380
        %v388 = vadd.f32 %v374, %v380
        %v389 = vadd.f32 %v375, %v380
        %v390 = vld [vmem:[%s3] sm:$0xff]
        %v391 = vld [vmem:[%s3 + $0x8] sm:$0xff]
        %v392 = vld [vmem:[%s3 + $0x10] sm:$0xff]
        %v393 = vld [vmem:[%s3 + $0x18] sm:$0xff]
        %v395 = vsel %vm256, %v382, 0
        %v398 = vsel %vm256, %v383, 0
        %v401 = vsel %vm256, %v384, 0
        %v404 = vsel %vm256, %v385, 0
        %v407 = vsel %vm256, %v386, 0
        %v410 = vsel %vm256, %v387, 0
        %v413 = vsel %vm256, %v388, 0
        %v416 = vsel %vm256, %v389, 0
        %418 = vmatprep.subr.mxu0 0.0
        %419 = vmatpush1.msra.mxu0 0.0
        %420 = vmatprep.subr.mxu0 0.0
        %421 = vmatpush1.msra.mxu0 0.0
        %422 = vmatprep.subr.mxu0 0.0
        %423 = vmatpush1.msra.mxu0 0.0
        %424 = vmatprep.subr.mxu0 0.0
        %425 = vmatpush1.msra.mxu0 0.0
        %426 = vmatprep.subr.mxu0 0.0
        %427 = vmatpush1.msra.mxu0 0.0
        %428 = vmatprep.subr.mxu0 0.0
        %429 = vmatpush1.msra.mxu0 0.0
        %430 = vmatprep.subr.mxu0 0.0
        %431 = vmatpush1.msra.mxu0 0.0
        %432 = vmatprep.subr.mxu0 0.0
        %433 = vmatpush1.msra.mxu0 0.0
        %434 = vmatprep.subr.mxu0 0.0
        %435 = vmatpush1.msra.mxu0 0.0
        %436 = vmatprep.subr.mxu0 0.0
        %437 = vmatpush1.msra.mxu0 0.0
        %438 = vmatprep.subr.mxu0 0.0
        %439 = vmatpush1.msra.mxu0 0.0
        %440 = vmatprep.subr.mxu0 0.0
        %441 = vmatpush1.msra.mxu0 0.0
        %442 = vmatprep.subr.mxu0 0.0
        %443 = vmatpush1.msra.mxu0 %v393
        %444 = vmatprep.subr.mxu0 0.0
        %445 = vmatpush1.msra.mxu0 %v392
        %446 = vmatprep.subr.mxu0 0.0
        %447 = vmatpush1.msra.mxu0 %v391
        %448 = vmatprep.subr.mxu0 0.0
        %449 = vmatpush1.msra.mxu0 %v390
        %450 = vmatprep.subr.mxu0 0.0
        %451 = vmatpush2.msra.mxu0 0.0
        %452 = vmatprep.subr.mxu0 0.0
        %453 = vmatpush2.msra.mxu0 0.0
        %454 = vmatprep.subr.mxu0 0.0
        %455 = vmatpush2.msra.mxu0 0.0
        %456 = vmatprep.subr.mxu0 0.0
        %457 = vmatpush2.msra.mxu0 0.0
        %458 = vmatprep.subr.mxu0 0.0
        %459 = vmatpush2.msra.mxu0 0.0
        %460 = vmatprep.subr.mxu0 0.0
        %461 = vmatpush2.msra.mxu0 0.0
        %462 = vmatprep.subr.mxu0 0.0
        %463 = vmatpush2.msra.mxu0 0.0
        %464 = vmatprep.subr.mxu0 0.0
        %465 = vmatpush2.msra.mxu0 0.0
        %466 = vmatprep.subr.mxu0 0.0
        %467 = vmatpush2.msra.mxu0 0.0
        %468 = vmatprep.subr.mxu0 0.0
        %469 = vmatpush2.msra.mxu0 0.0
        %470 = vmatprep.subr.mxu0 0.0
        %471 = vmatpush2.msra.mxu0 0.0
        %472 = vmatprep.subr.mxu0 0.0
        %473 = vmatpush2.msra.mxu0 0.0
        %474 = vmatprep.subr.mxu0 0.0
        %475 = vmatpush2.msra.mxu0 0.0
        %476 = vmatprep.subr.mxu0 0.0
        %477 = vmatpush2.msra.mxu0 0.0
        %478 = vmatprep.subr.mxu0 0.0
        %479 = vmatpush2.msra.mxu0 0.0
        %480 = vmatprep.subr.mxu0 0.0
        %481 = vmatpush2.msra.mxu0 0.0
        %482 = vmatprep.mubr.f32.mxu0 0.0
        %483 = vmatmul.mubr.f32.gmra.mxu0 %v395
        %v484 = vpop.f32.mrf.mxu0
        %v485 = vadd.f32 0.0, %v484
        %v486 = vpop.f32.mrf.mxu0
        %487 = vmatprep.mubr.f32.mxu0 0.0
        %488 = vmatmul.mubr.f32.gmra.mxu0 %v398
        %v489 = vpop.f32.mrf.mxu0
        %v490 = vadd.f32 0.0, %v489
        %v491 = vpop.f32.mrf.mxu0
        %492 = vmatprep.mubr.f32.mxu0 0.0
        %493 = vmatmul.mubr.f32.gmra.mxu0 %v401
        %v494 = vpop.f32.mrf.mxu0
        %v495 = vadd.f32 0.0, %v494
        %v496 = vpop.f32.mrf.mxu0
        %497 = vmatprep.mubr.f32.mxu0 0.0
        %498 = vmatmul.mubr.f32.gmra.mxu0 %v404
        %v499 = vpop.f32.mrf.mxu0
        %v500 = vadd.f32 0.0, %v499
        %v501 = vpop.f32.mrf.mxu0
        %502 = vmatprep.mubr.f32.mxu0 0.0
        %503 = vmatmul.mubr.f32.gmra.mxu0 %v407
        %v504 = vpop.f32.mrf.mxu0
        %v505 = vadd.f32 0.0, %v504
        %v506 = vpop.f32.mrf.mxu0
        %507 = vmatprep.mubr.f32.mxu0 0.0
        %508 = vmatmul.mubr.f32.gmra.mxu0 %v410
        %v509 = vpop.f32.mrf.mxu0
        %v510 = vadd.f32 0.0, %v509
        %v511 = vpop.f32.mrf.mxu0
        %512 = vmatprep.mubr.f32.mxu0 0.0
        %513 = vmatmul.mubr.f32.gmra.mxu0 %v413
        %v514 = vpop.f32.mrf.mxu0
        %v515 = vadd.f32 0.0, %v514
        %v516 = vpop.f32.mrf.mxu0
        %517 = vmatprep.mubr.f32.mxu0 0.0
        %518 = vmatmul.mubr.f32.gmra.mxu0 %v416
        %v519 = vpop.f32.mrf.mxu0
        %v520 = vadd.f32 0.0, %v519
        %v521 = vpop.f32.mrf.mxu0
        %522 = vdwg.mxu0
        %vm523 = vcmask 31744
        %524 = vst.msk [vmem:[%s244] sm:$0xff] %vm523, %v485
        %525 = vst.msk [vmem:[%s244 + $0x8] sm:$0xff] %vm523, %v490
        %526 = vst.msk [vmem:[%s244 + $0x10] sm:$0xff] %vm523, %v495
        %527 = vst.msk [vmem:[%s244 + $0x18] sm:$0xff] %vm523, %v500
        %528 = vst.msk [vmem:[%s244 + $0x20] sm:$0xff] %vm523, %v505
        %529 = vst.msk [vmem:[%s244 + $0x28] sm:$0xff] %vm523, %v510
        %530 = vst.msk [vmem:[%s244 + $0x30] sm:$0xff] %vm523, %v515
        %531 = vst.msk [vmem:[%s244 + $0x38] sm:$0xff] %vm523, %v520
        %s532 = smul.u32 8, %s23
        %p533 = scmp.lt.s32.totalorder %s22, 1
        %s534 = scalar_select %p533, %s22, 1
        %p535 = scmp.lt.s32.totalorder %s532, 7
        %s536 = scalar_select %p535, %s532, 7
        %s537 = smul.addr %s534, 8
        %s538 = sadd.s32 %s536, %s537
        %s539 = smul.addr %s538, 8
        %s540 = scalar_lea.vmem %s4, %s539
        // Predicated region
        $region41: #{tpu_custom_call.1} parent=35 // pred_check
          %p541 = pneg %p141
        $region42: #{tpu_custom_call.1} parent=35 // pred_check_branch
          %543 = sbr.rel (%p541) target = $region44
        $region43: #{tpu_custom_call.1} parent=35 // pred_region
          %s544 = smul.u32 8, %s23
        $region44: #{tpu_custom_call.1} parent=35 // pred_fallthru
          _
      $region36: #{tpu_custom_call.1} parent=5 // pred_fallthru
        _
      %p545 = scmp.le.s32.totalorder 2, %s13
      // Predicated region
      $region45: #{tpu_custom_call.1} parent=5 // pred_check
        %p546 = pneg %p545
      $region46: #{tpu_custom_call.1} parent=5 // pred_check_branch
        %548 = sbr.rel (%p546) target = $region48
      $region47: #{tpu_custom_call.1} parent=5 // pred_region
        %s549 = ssub.s32 %s13, 2
        // Predicated region
        $region49: #{tpu_custom_call.1} parent=47 // pred_check
          %p550 = pneg %p147
        $region50: #{tpu_custom_call.1} parent=47 // pred_check_branch
          %552 = sbr.rel (%p550) target = $region52
        $region51: #{tpu_custom_call.1} parent=47 // pred_region
          %s553 = smul.u32 8, %s25
          %p554 = scmp.lt.s32.totalorder %s24, 1
          %s555 = scalar_select %p554, %s24, 1
          %p556 = scmp.lt.s32.totalorder %s553, 7
          %s557 = scalar_select %p556, %s553, 7
          %s558 = smul.addr %s555, 8
          %s559 = sadd.s32 %s557, %s558
          %s560 = smul.addr %s559, 8
          %s561 = scalar_lea.vmem %s4, %s560
        $region52: #{tpu_custom_call.1} parent=47 // pred_fallthru
          _
      $region48: #{tpu_custom_call.1} parent=5 // pred_fallthru
        _
    $region6: #{tpu_custom_call.1} parent=1 // loop_footer
      %s17 = sadd.s32 1, %s13
    $region7: #{tpu_custom_call.1} parent=1 // loop_footer_branch
      %12 = sbr.rel target = $region3
    $region8: #{tpu_custom_call.1} parent=1 // loop_exit
      _
    %562 = vsyncpa [#allocation3], 1
    %s563 = scalar_lea.sflag [#allocation3], 1
    %564 = vsyncpa %s563, 1

</llo_original>
